<compile_context>
chip_gen: v7x
topology: tpu7x:2x2x1
jax: 0.10.0
libtpu: 0.0.40
codegen_flags: <defaults>
</compile_context>

<pallas_src>
import functools

import jax
import jax.numpy as jnp
from jax.experimental import pallas as pl
from jax.experimental.pallas import tpu as pltpu


def _round_up(n: int, m: int) -> int:
    return ((n + m - 1) // m) * m


def _pad2(x, rows: int, cols: int):
    r, c = x.shape
    return jnp.pad(x, ((0, rows - r), (0, cols - c)))


def _sage_kernel(a_ref, x_ref, w1_ref, b1_ref, w2_ref, b2_ref, o_ref):
    """Fused SAGE forward on padded, fully VMEM-resident operands.

    a:  (Np, Np)  bf16  degree-normalized adjacency (mean aggregation, rows=targets)
    x:  (Np, Fp)  bf16  node features
    w1: (Fp, 2Hp) bf16  [Wl1 | Wr1]   b1: (1, Hp) f32
    w2: (Hp, 2Cp) bf16  [Wl2 | Wr2]   b2: (1, Cp) f32 (padded lanes = -1e30)
    o:  (Np, Cp)  f32   log_softmax logits
    """
    a = a_ref[...]
    x = x_ref[...]
    hp = w1_ref.shape[1] // 2
    cp = w2_ref.shape[1] // 2

    # ---- SAGEConv 1: project first, then aggregate only the lin_l half ----
    p1 = jnp.dot(x, w1_ref[...], preferred_element_type=jnp.float32)      # (Np, 2Hp)
    agg1 = jnp.dot(a, p1[:, :hp].astype(jnp.bfloat16),
                   preferred_element_type=jnp.float32)                    # (Np, Hp)
    h = jnp.maximum(agg1 + p1[:, hp:] + b1_ref[...], 0.0)                 # ReLU (VPU)
    hb = h.astype(jnp.bfloat16)

    # ---- SAGEConv 2 ----
    p2 = jnp.dot(hb, w2_ref[...], preferred_element_type=jnp.float32)     # (Np, 2Cp)
    agg2 = jnp.dot(a, p2[:, :cp].astype(jnp.bfloat16),
                   preferred_element_type=jnp.float32)                    # (Np, Cp)
    z = agg2 + p2[:, cp:] + b2_ref[...]   # padded class lanes -> ~-1e30 via b2

    # ---- log_softmax (padded lanes contribute exp(-1e30) == 0) ----
    m = jnp.max(z, axis=-1, keepdims=True)
    e = jnp.exp(z - m)
    lse = m + jnp.log(jnp.sum(e, axis=-1, keepdims=True))
    o_ref[...] = (z - lse).astype(o_ref.dtype)


# ---------------------------------------------------------------------------
# Host-side (one-time) preprocessing — cache these across forward calls.
# ---------------------------------------------------------------------------

def build_mean_adjacency(edge_index, num_nodes):
    """Dense degree-normalized adjacency for mean aggregation (rows = targets)."""
    src = edge_index[0]
    dst = edge_index[1]
    a = jnp.zeros((num_nodes, num_nodes), jnp.float32).at[dst, src].add(1.0)
    deg = jnp.sum(a, axis=1, keepdims=True)
    return a / jnp.maximum(deg, 1.0)          # isolated nodes aggregate to 0


def preprocess_graph(edge_index, num_nodes):
    """Padded bf16 adjacency. Node dim padded to 16 (bf16 sublane pack) only."""
    np_ = _round_up(num_nodes, 16)
    a = build_mean_adjacency(edge_index, num_nodes)
    return _pad2(a, np_, np_).astype(jnp.bfloat16)


def preprocess_params(params, dim_in):
    """Pad + concatenate weights: [Wl | Wr] per layer; biases stay f32.
    Layer-2 bias pad lanes get -1e30 so log_softmax ignores padded classes."""
    (wl1, wr1, b1), (wl2, wr2, b2) = params
    hdim, cdim = wl1.shape[1], wl2.shape[1]
    fp, hp, cp = (_round_up(d, 128) for d in (dim_in, hdim, cdim))
    w1_p = jnp.concatenate([_pad2(wl1, fp, hp), _pad2(wr1, fp, hp)],
                           axis=1).astype(jnp.bfloat16)                   # (Fp, 2Hp)
    w2_p = jnp.concatenate([_pad2(wl2, hp, cp), _pad2(wr2, hp, cp)],
                           axis=1).astype(jnp.bfloat16)                   # (Hp, 2Cp)
    b1_p = _pad2(b1, 1, hp)                                               # f32
    b2_p = jnp.full((1, cp), -1e30, jnp.float32).at[:, :cdim].set(b2)     # f32
    return w1_p, b1_p, w2_p, b2_p


# ---------------------------------------------------------------------------
# Forward
# ---------------------------------------------------------------------------

@functools.partial(jax.jit, static_argnames=("num_nodes", "num_classes"))
def sage_forward(x, a_p, w1_p, b1_p, w2_p, b2_p, *, num_nodes, num_classes):
    """x: (N, F) f32 node features; a_p / weights from the preprocess_* helpers."""
    np_ = a_p.shape[0]
    fp = w1_p.shape[0]
    cp = w2_p.shape[1] // 2
    x_p = _pad2(x, np_, fp).astype(jnp.bfloat16)

    vmem = pl.BlockSpec(memory_space=pltpu.MemorySpace.VMEM)   # whole array, single buffer
    out_p = pl.pallas_call(
        _sage_kernel,
        out_shape=jax.ShapeDtypeStruct((np_, cp), jnp.float32),
        in_specs=[vmem] * 6,
        out_specs=vmem,
        compiler_params=pltpu.CompilerParams(vmem_limit_bytes=64 * 1024 * 1024),
    )(a_p, x_p, w1_p, b1_p, w2_p, b2_p)

    return out_p[:num_nodes, :num_classes]


def init_sage_params(key, dim_in, dim_out, dim_hidden=128):
    """SAGEConv = lin_l (bias) on aggregated features + lin_r (no bias) on root features.
    torch.nn.Linear-style U(-1/sqrt(fan_in), 1/sqrt(fan_in)); weights stored as (in, out)."""
    def init_conv(k, fan_in, fan_out):
        kl, kr, kb = jax.random.split(k, 3)
        bound = 1.0 / (fan_in ** 0.5)
        wl = jax.random.uniform(kl, (fan_in, fan_out), jnp.float32, -bound, bound)
        wr = jax.random.uniform(kr, (fan_in, fan_out), jnp.float32, -bound, bound)
        b = jax.random.uniform(kb, (1, fan_out), jnp.float32, -bound, bound)
        return wl, wr, b
    k1, k2 = jax.random.split(key)
    return [init_conv(k1, dim_in, dim_hidden), init_conv(k2, dim_hidden, dim_out)]


def ref_forward(x, edge_index, params):
    """Pure-JAX f32 reference (module semantics: aggregate-then-project)."""
    (wl1, wr1, b1), (wl2, wr2, b2) = params
    a = build_mean_adjacency(edge_index, x.shape[0])
    hi = jax.lax.Precision.HIGHEST
    mm = lambda p, q: jnp.dot(p, q, precision=hi)
    h = jnp.maximum(mm(mm(a, x), wl1) + mm(x, wr1) + b1, 0.0)
    z = mm(mm(a, h), wl2) + mm(h, wr2) + b2
    return jax.nn.log_softmax(z, axis=-1)


if __name__ == "__main__":
    key = jax.random.PRNGKey(0)
    k_x, k_e, k_p = jax.random.split(key, 3)

    num_nodes, dim_in, dim_hidden, dim_out, num_edges = 16, 8, 32, 4, 48
    x = jax.random.normal(k_x, (num_nodes, dim_in), jnp.float32)
    edge_index = jax.random.randint(k_e, (2, num_edges), 0, num_nodes, jnp.int32)
    params = init_sage_params(k_p, dim_in, dim_out, dim_hidden)

    # One-time preprocessing (static graph / fixed params) — reused every forward.
    a_p = preprocess_graph(edge_index, num_nodes)
    w1_p, b1_p, w2_p, b2_p = preprocess_params(params, dim_in)

    out = sage_forward(x, a_p, w1_p, b1_p, w2_p, b2_p,
                       num_nodes=num_nodes, num_classes=dim_out)
    jax.block_until_ready(out)

    ref = ref_forward(x, edge_index, params)
    assert out.shape == (num_nodes, dim_out)
    assert bool(jnp.all(jnp.isfinite(out)))
    assert jnp.allclose(out, ref, atol=5e-2, rtol=5e-2), \
        f"max abs err {float(jnp.max(jnp.abs(out - ref)))}"

    print("KERNEL_OK")
</pallas_src>

<mosaic_0001>
module attributes {stable_mosaic.version = 11 : i64} {
  func.func @_sage_kernel(%arg0: memref<16x16xbf16, #tpu.memory_space<vmem>>, %arg1: memref<16x128xbf16, #tpu.memory_space<vmem>>, %arg2: memref<128x256xbf16, #tpu.memory_space<vmem>>, %arg3: memref<1x128xf32, #tpu.memory_space<vmem>>, %arg4: memref<128x256xbf16, #tpu.memory_space<vmem>>, %arg5: memref<1x128xf32, #tpu.memory_space<vmem>>, %arg6: memref<16x128xf32, #tpu.memory_space<vmem>>) attributes {dimension_semantics = [], scalar_prefetch = 0 : i64, scratch_operands = 0 : i64, tpu.core_type = #tpu.core_type<tc>} {
    %c0 = arith.constant 0 : index
    %c0_0 = arith.constant 0 : index
    %0 = vector.load %arg0[%c0, %c0_0] : memref<16x16xbf16, #tpu.memory_space<vmem>>, vector<16x16xbf16>
    %c0_1 = arith.constant 0 : index
    %c0_2 = arith.constant 0 : index
    %1 = vector.load %arg1[%c0_1, %c0_2] : memref<16x128xbf16, #tpu.memory_space<vmem>>, vector<16x128xbf16>
    %c0_3 = arith.constant 0 : index
    %c0_4 = arith.constant 0 : index
    %2 = vector.load %arg2[%c0_3, %c0_4] : memref<128x256xbf16, #tpu.memory_space<vmem>>, vector<128x256xbf16>
    %cst = arith.constant dense<0.000000e+00> : vector<16x256xf32>
    %3 = tpu.matmul %1, %2, %cst {dimension_numbers = #tpu.dot_dimension_numbers<[1], [0], [0], [1], [0, 0, 1, 1], [], []>} : vector<16x128xbf16>, vector<128x256xbf16>, vector<16x256xf32> -> vector<16x256xf32>
    %4 = vector.extract_strided_slice %3 {offsets = [0, 0], sizes = [16, 128], strides = [1, 1]} : vector<16x256xf32> to vector<16x128xf32>
    %5 = arith.truncf %4 : vector<16x128xf32> to vector<16x128xbf16>
    %cst_5 = arith.constant dense<0.000000e+00> : vector<16x128xf32>
    %6 = tpu.matmul %0, %5, %cst_5 {dimension_numbers = #tpu.dot_dimension_numbers<[1], [0], [0], [1], [0, 0, 1, 1], [], []>} : vector<16x16xbf16>, vector<16x128xbf16>, vector<16x128xf32> -> vector<16x128xf32>
    %7 = vector.extract_strided_slice %3 {offsets = [0, 128], sizes = [16, 128], strides = [1, 1]} : vector<16x256xf32> to vector<16x128xf32>
    %8 = arith.addf %6, %7 : vector<16x128xf32>
    %c0_6 = arith.constant 0 : index
    %c0_7 = arith.constant 0 : index
    %9 = vector.load %arg3[%c0_6, %c0_7] : memref<1x128xf32, #tpu.memory_space<vmem>>, vector<1x128xf32>
    %10 = vector.broadcast %9 : vector<1x128xf32> to vector<16x128xf32>
    %11 = arith.addf %8, %10 : vector<16x128xf32>
    %cst_8 = arith.constant 0.000000e+00 : f32
    %12 = vector.broadcast %cst_8 : f32 to vector<16x128xf32>
    %13 = arith.maximumf %11, %12 : vector<16x128xf32>
    %14 = arith.truncf %13 : vector<16x128xf32> to vector<16x128xbf16>
    %c0_9 = arith.constant 0 : index
    %c0_10 = arith.constant 0 : index
    %15 = vector.load %arg4[%c0_9, %c0_10] : memref<128x256xbf16, #tpu.memory_space<vmem>>, vector<128x256xbf16>
    %cst_11 = arith.constant dense<0.000000e+00> : vector<16x256xf32>
    %16 = tpu.matmul %14, %15, %cst_11 {dimension_numbers = #tpu.dot_dimension_numbers<[1], [0], [0], [1], [0, 0, 1, 1], [], []>} : vector<16x128xbf16>, vector<128x256xbf16>, vector<16x256xf32> -> vector<16x256xf32>
    %17 = vector.extract_strided_slice %16 {offsets = [0, 0], sizes = [16, 128], strides = [1, 1]} : vector<16x256xf32> to vector<16x128xf32>
    %18 = arith.truncf %17 : vector<16x128xf32> to vector<16x128xbf16>
    %cst_12 = arith.constant dense<0.000000e+00> : vector<16x128xf32>
    %19 = tpu.matmul %0, %18, %cst_12 {dimension_numbers = #tpu.dot_dimension_numbers<[1], [0], [0], [1], [0, 0, 1, 1], [], []>} : vector<16x16xbf16>, vector<16x128xbf16>, vector<16x128xf32> -> vector<16x128xf32>
    %20 = vector.extract_strided_slice %16 {offsets = [0, 128], sizes = [16, 128], strides = [1, 1]} : vector<16x256xf32> to vector<16x128xf32>
    %21 = arith.addf %19, %20 : vector<16x128xf32>
    %c0_13 = arith.constant 0 : index
    %c0_14 = arith.constant 0 : index
    %22 = vector.load %arg5[%c0_13, %c0_14] : memref<1x128xf32, #tpu.memory_space<vmem>>, vector<1x128xf32>
    %23 = vector.broadcast %22 : vector<1x128xf32> to vector<16x128xf32>
    %24 = arith.addf %21, %23 : vector<16x128xf32>
    %cst_15 = arith.constant dense<0xFF800000> : vector<16xf32>
    %25 = vector.multi_reduction <maximumf>, %24, %cst_15 [1] : vector<16x128xf32> to vector<16xf32>
    %26 = vector.shape_cast %25 : vector<16xf32> to vector<16x1xf32>
    %27 = vector.broadcast %26 : vector<16x1xf32> to vector<16x128xf32>
    %28 = arith.subf %24, %27 : vector<16x128xf32>
    %29 = math.exp %28 : vector<16x128xf32>
    %cst_16 = arith.constant dense<0.000000e+00> : vector<16xf32>
    %30 = vector.multi_reduction <add>, %29, %cst_16 [1] : vector<16x128xf32> to vector<16xf32>
    %31 = vector.shape_cast %30 : vector<16xf32> to vector<16x1xf32>
    %32 = math.log %31 : vector<16x1xf32>
    %33 = arith.addf %26, %32 : vector<16x1xf32>
    %34 = vector.broadcast %33 : vector<16x1xf32> to vector<16x128xf32>
    %35 = arith.subf %24, %34 : vector<16x128xf32>
    %c0_17 = arith.constant 0 : index
    %c0_18 = arith.constant 0 : index
    %36 = vector.load %arg6[%c0_17, %c0_18] : memref<16x128xf32, #tpu.memory_space<vmem>>, vector<16x128xf32>
    tpu.vector_store %arg6[%c0_17, %c0_18], %35 {strides = array<i32>} : memref<16x128xf32, #tpu.memory_space<vmem>>, vector<16x128xf32>,
    return
  }
}

</mosaic_0001>

<llo_original>
// kernel: sage_forward.1
$region0: #{sage_forward.1}
  #allocation0 [shape = 'u32[]', space=smem, size = 0x4, offset = 0x4, fixed_abs, tag = 'smem constant byte address 0x4 - core index']
  #allocation1 [shape = 'u32[144,128]{1,0:T(1,128)}', space=vmem, size = 0x12000, scoped, tag = 'internal scratch']
  %s0 = inlined_call_operand.hbm [shape: bf16[16,16], index: 0, kind: input, shape index: {}]
  %s1 = inlined_call_operand.hbm [shape: bf16[16,128], index: 1, kind: input, shape index: {}]
  %s2 = inlined_call_operand.hbm [shape: bf16[128,256], index: 2, kind: input, shape index: {}]
  %s3 = inlined_call_operand.hbm [shape: f32[1,128], index: 3, kind: input, shape index: {}]
  %s4 = inlined_call_operand.hbm [shape: bf16[128,256], index: 4, kind: input, shape index: {}]
  %s5 = inlined_call_operand.hbm [shape: f32[1,128], index: 5, kind: input, shape index: {}]
  %s6 = inlined_call_operand.hbm [shape: f32[16,128], index: 6, kind: output, shape index: {}]
  %s7 = sld [smem:[#allocation0]]
  $region58: #{sage_forward.1} parent=0
    _
  %s9 = ssub.s32 1, %s7
  %s10 = scalar_select 0, %s9, %s7
  $region1: #{sage_forward.1} parent=0
    #allocation2 [shape = 'u8[4096]{0}', space=vmem, size = 0x1000, scoped, tag = 'input window, operand 0, single buffered']
    #allocation3 [shape = 's32[1]{0}', space=sflag, size = 0x4, scoped, tag = 'scoped memory for sage_forward.1']
    #allocation4 [shape = 's32[1]{0}', space=sflag, size = 0x4, scoped, tag = 'scoped memory for sage_forward.1']
    #allocation5 [shape = 'u8[4096]{0}', space=vmem, size = 0x1000, scoped, tag = 'input window, operand 1, single buffered']
    #allocation6 [shape = 's32[1]{0}', space=sflag, size = 0x4, scoped, tag = 'scoped memory for sage_forward.1']
    #allocation7 [shape = 'u8[65536]{0}', space=vmem, size = 0x10000, scoped, tag = 'input window, operand 2, single buffered']
    #allocation8 [shape = 'u8[512]{0}', space=vmem, size = 0x400, scoped, tag = 'input window, operand 3, single buffered']
    #allocation9 [shape = 's32[1]{0}', space=sflag, size = 0x4, scoped, tag = 'scoped memory for sage_forward.1']
    #allocation10 [shape = 'u8[65536]{0}', space=vmem, size = 0x10000, scoped, tag = 'input window, operand 4, single buffered']
    #allocation11 [shape = 'u8[512]{0}', space=vmem, size = 0x400, scoped, tag = 'input window, operand 5, single buffered']
    #allocation12 [shape = 's32[1]{0}', space=sflag, size = 0x4, scoped, tag = 'scoped memory for sage_forward.1']
    #allocation13 [shape = 'u8[8192]{0}', space=vmem, size = 0x2000, scoped, tag = 'output window, operand 0, single buffered']
    %11 = vsyncpa [#allocation3], 0
    %12 = vsyncpa [#allocation6], 0
    %13 = vsyncpa [#allocation9], 0
    %14 = vsyncpa [#allocation12], 0
    %15 = vsyncpa [#allocation4], 0
    // Predicated region
    $region2: #{sage_forward.1} parent=1 // pred_check
      _
    $region3: #{sage_forward.1} parent=1 // pred_check_branch
      %17 = sbr.rel (0) target = $region5
    $region4: #{sage_forward.1} parent=1 // pred_region
      %s19 = ssub.s32 128, 128
      %20 = vsyncadd [#allocation3], %s19
      %s21 = sshll.u32 [#allocation2], 4
      %s22 = int_to_ptr.vmem [resolvable:$true] %s21
      %27 = dma.hbm_to_vmem [thread:$0]  %s0, 128, %s22, [#allocation3], 64, 64, 4
    $region5: #{sage_forward.1} parent=1 // pred_fallthru
      _
    // Predicated region
    $region6: #{sage_forward.1} parent=1 // pred_check
      _
    $region7: #{sage_forward.1} parent=1 // pred_check_branch
      %29 = sbr.rel (0) target = $region9
    $region8: #{sage_forward.1} parent=1 // pred_region
      %s31 = ssub.s32 128, 128
      %32 = vsyncadd [#allocation6], %s31
      %s33 = sshll.u32 [#allocation5], 4
      %s34 = int_to_ptr.vmem [resolvable:$true] %s33
      %39 = dma.hbm_to_vmem [thread:$0]  %s1, 128, %s34, [#allocation6], 64, 64, 4
    $region9: #{sage_forward.1} parent=1 // pred_fallthru
      _
    // Predicated region
    $region10: #{sage_forward.1} parent=1 // pred_check
      _
    $region11: #{sage_forward.1} parent=1 // pred_check_branch
      %41 = sbr.rel (0) target = $region13
    $region12: #{sage_forward.1} parent=1 // pred_region
      %s43 = ssub.s32 2048, 2048
      %44 = vsyncadd [#allocation6], %s43
      %s45 = sshll.u32 [#allocation7], 4
      %s46 = int_to_ptr.vmem [resolvable:$true] %s45
      %51 = dma.hbm_to_vmem [thread:$0]  %s2, 2048, %s46, [#allocation6], 128, 128, 8
    $region13: #{sage_forward.1} parent=1 // pred_fallthru
      _
    // Predicated region
    $region14: #{sage_forward.1} parent=1 // pred_check
      _
    $region15: #{sage_forward.1} parent=1 // pred_check_branch
      %53 = sbr.rel (0) target = $region17
    $region16: #{sage_forward.1} parent=1 // pred_region
      %s55 = ssub.s32 16, 16
      %56 = vsyncadd [#allocation9], %s55
      %s58 = sshll.u32 [#allocation8], 4
      %s59 = int_to_ptr.vmem [resolvable:$true] %s58
      %61 = dma.hbm_to_vmem [thread:$0]  %s3, 16, %s59, [#allocation9]
    $region17: #{sage_forward.1} parent=1 // pred_fallthru
      _
    // Predicated region
    $region18: #{sage_forward.1} parent=1 // pred_check
      _
    $region19: #{sage_forward.1} parent=1 // pred_check_branch
      %63 = sbr.rel (0) target = $region21
    $region20: #{sage_forward.1} parent=1 // pred_region
      %s65 = ssub.s32 2048, 2048
      %66 = vsyncadd [#allocation9], %s65
      %s67 = sshll.u32 [#allocation10], 4
      %s68 = int_to_ptr.vmem [resolvable:$true] %s67
      %73 = dma.hbm_to_vmem [thread:$0]  %s4, 2048, %s68, [#allocation9], 128, 128, 8
    $region21: #{sage_forward.1} parent=1 // pred_fallthru
      _
    // Predicated region
    $region22: #{sage_forward.1} parent=1 // pred_check
      _
    $region23: #{sage_forward.1} parent=1 // pred_check_branch
      %75 = sbr.rel (0) target = $region25
    $region24: #{sage_forward.1} parent=1 // pred_region
      %s77 = ssub.s32 16, 16
      %78 = vsyncadd [#allocation12], %s77
      %s80 = sshll.u32 [#allocation11], 4
      %s81 = int_to_ptr.vmem [resolvable:$true] %s80
      %83 = dma.hbm_to_vmem [thread:$0]  %s5, 16, %s81, [#allocation12]
    $region25: #{sage_forward.1} parent=1 // pred_fallthru
      _
    // Predicated region
    $region26: #{sage_forward.1} parent=1 // pred_check
      _
    $region27: #{sage_forward.1} parent=1 // pred_check_branch
      %85 = sbr.rel (0) target = $region29
    $region28: #{sage_forward.1} parent=1 // pred_region
      %86 = dma.done [#allocation3], 128
    $region29: #{sage_forward.1} parent=1 // pred_fallthru
      _
    // Predicated region
    $region30: #{sage_forward.1} parent=1 // pred_check
      _
    $region31: #{sage_forward.1} parent=1 // pred_check_branch
      %88 = sbr.rel (0) target = $region33
    $region32: #{sage_forward.1} parent=1 // pred_region
      %89 = dma.done [#allocation6], 128
    $region33: #{sage_forward.1} parent=1 // pred_fallthru
      _
    // Predicated region
    $region34: #{sage_forward.1} parent=1 // pred_check
      _
    $region35: #{sage_forward.1} parent=1 // pred_check_branch
      %91 = sbr.rel (0) target = $region37
    $region36: #{sage_forward.1} parent=1 // pred_region
      %92 = dma.done [#allocation6], 2048
    $region37: #{sage_forward.1} parent=1 // pred_fallthru
      _
    // Predicated region
    $region38: #{sage_forward.1} parent=1 // pred_check
      _
    $region39: #{sage_forward.1} parent=1 // pred_check_branch
      %94 = sbr.rel (0) target = $region41
    $region40: #{sage_forward.1} parent=1 // pred_region
      %95 = dma.done [#allocation9], 16
    $region41: #{sage_forward.1} parent=1 // pred_fallthru
      _
    // Predicated region
    $region42: #{sage_forward.1} parent=1 // pred_check
      _
    $region43: #{sage_forward.1} parent=1 // pred_check_branch
      %97 = sbr.rel (0) target = $region45
    $region44: #{sage_forward.1} parent=1 // pred_region
      %98 = dma.done [#allocation9], 2048
    $region45: #{sage_forward.1} parent=1 // pred_fallthru
      _
    // Predicated region
    $region46: #{sage_forward.1} parent=1 // pred_check
      _
    $region47: #{sage_forward.1} parent=1 // pred_check_branch
      %100 = sbr.rel (0) target = $region49
    $region48: #{sage_forward.1} parent=1 // pred_region
      %101 = dma.done [#allocation12], 16
    $region49: #{sage_forward.1} parent=1 // pred_fallthru
      _
    %v103 = vld [vmem:[#allocation2] sm:$0xf]
    %v104 = vld [vmem:[#allocation2 + $0x4] sm:$0xf]
    %v105 = vld [vmem:[#allocation5] sm:$0xf]
    %v106 = vld [vmem:[#allocation5 + $0x4] sm:$0xf]
    %v107 = vld [vmem:[#allocation7] sm:$0xff]
    %v108 = vld [vmem:[#allocation7 + $0x8] sm:$0xff]
    %v109 = vld [vmem:[#allocation7 + $0x10] sm:$0xff]
    %v110 = vld [vmem:[#allocation7 + $0x18] sm:$0xff]
    %v111 = vld [vmem:[#allocation7 + $0x20] sm:$0xff]
    %v112 = vld [vmem:[#allocation7 + $0x28] sm:$0xff]
    %v113 = vld [vmem:[#allocation7 + $0x30] sm:$0xff]
    %v114 = vld [vmem:[#allocation7 + $0x38] sm:$0xff]
    %v115 = vld [vmem:[#allocation7 + $0x40] sm:$0xff]
    %v116 = vld [vmem:[#allocation7 + $0x48] sm:$0xff]
    %v117 = vld [vmem:[#allocation7 + $0x50] sm:$0xff]
    %v118 = vld [vmem:[#allocation7 + $0x58] sm:$0xff]
    %v119 = vld [vmem:[#allocation7 + $0x60] sm:$0xff]
    %v120 = vld [vmem:[#allocation7 + $0x68] sm:$0xff]
    %v121 = vld [vmem:[#allocation7 + $0x70] sm:$0xff]
    %v122 = vld [vmem:[#allocation7 + $0x78] sm:$0xff]
    %v125 = vunpack.c.l.b16 %v105
    %v126 = vunpack.c.l.b16 %v106
    %v127 = vpack.c.b16 %v126, %v125
    %v145 = vunpack.c.l.b16 %v107
    %v146 = vunpack.c.h.b16 %v107
    %v147 = vunpack.c.l.b16 %v108
    %v148 = vunpack.c.h.b16 %v108
    %v149 = vunpack.c.l.b16 %v109
    %v150 = vunpack.c.h.b16 %v109
    %v151 = vunpack.c.l.b16 %v110
    %v152 = vunpack.c.h.b16 %v110
    %v153 = vunpack.c.l.b16 %v111
    %v154 = vunpack.c.h.b16 %v111
    %v155 = vunpack.c.l.b16 %v112
    %v156 = vunpack.c.h.b16 %v112
    %v157 = vunpack.c.l.b16 %v113
    %v158 = vunpack.c.h.b16 %v113
    %v159 = vunpack.c.l.b16 %v114
    %v160 = vunpack.c.h.b16 %v114
    %v161 = vunpack.c.l.b16 %v115
    %v162 = vunpack.c.h.b16 %v115
    %v163 = vunpack.c.l.b16 %v116
    %v164 = vunpack.c.h.b16 %v116
    %v165 = vunpack.c.l.b16 %v117
    %v166 = vunpack.c.h.b16 %v117
    %v167 = vunpack.c.l.b16 %v118
    %v168 = vunpack.c.h.b16 %v118
    %v169 = vunpack.c.l.b16 %v119
    %v170 = vunpack.c.h.b16 %v119
    %v171 = vunpack.c.l.b16 %v120
    %v172 = vunpack.c.h.b16 %v120
    %v173 = vunpack.c.l.b16 %v121
    %v174 = vunpack.c.h.b16 %v121
    %v175 = vunpack.c.l.b16 %v122
    %v176 = vunpack.c.h.b16 %v122
    %v177 = vpack.c.b16 %v147, %v145
    %v178 = vpack.c.b16 %v148, %v146
    %v179 = vpack.c.b16 %v151, %v149
    %v180 = vpack.c.b16 %v152, %v150
    %v181 = vpack.c.b16 %v155, %v153
    %v182 = vpack.c.b16 %v156, %v154
    %v183 = vpack.c.b16 %v159, %v157
    %v184 = vpack.c.b16 %v160, %v158
    %v185 = vpack.c.b16 %v163, %v161
    %v186 = vpack.c.b16 %v164, %v162
    %v187 = vpack.c.b16 %v167, %v165
    %v188 = vpack.c.b16 %v168, %v166
    %v189 = vpack.c.b16 %v171, %v169
    %v190 = vpack.c.b16 %v172, %v170
    %v191 = vpack.c.b16 %v175, %v173
    %v192 = vpack.c.b16 %v176, %v174
    %209 = vmatprep.subr.bf16.mxu0 %v178
    %210 = vmatpush1.bf16.msra.mxu0 %v177
    %211 = vmatprep.subr.bf16.mxu0 %v180
    %212 = vmatpush1.bf16.msra.mxu0 %v179
    %213 = vmatprep.subr.bf16.mxu0 %v182
    %214 = vmatpush1.bf16.msra.mxu0 %v181
    %215 = vmatprep.subr.bf16.mxu0 %v184
    %216 = vmatpush1.bf16.msra.mxu0 %v183
    %217 = vmatprep.subr.bf16.mxu0 %v186
    %218 = vmatpush1.bf16.msra.mxu0 %v185
    %219 = vmatprep.subr.bf16.mxu0 %v188
    %220 = vmatpush1.bf16.msra.mxu0 %v187
    %221 = vmatprep.subr.bf16.mxu0 %v190
    %222 = vmatpush1.bf16.msra.mxu0 %v189
    %223 = vmatprep.subr.bf16.mxu0 %v192
    %224 = vmatpush1.bf16.msra.mxu0 %v191
    %225 = vmatprep.subr.bf16.mxu0 0
    %226 = vmatpush1.bf16.msra.mxu0 0
    %227 = vmatprep.subr.bf16.mxu0 0
    %228 = vmatpush1.bf16.msra.mxu0 0
    %229 = vmatprep.subr.bf16.mxu0 0
    %230 = vmatpush1.bf16.msra.mxu0 0
    %231 = vmatprep.subr.bf16.mxu0 0
    %232 = vmatpush1.bf16.msra.mxu0 0
    %233 = vmatprep.subr.bf16.mxu0 0
    %234 = vmatpush1.bf16.msra.mxu0 0
    %235 = vmatprep.subr.bf16.mxu0 0
    %236 = vmatpush1.bf16.msra.mxu0 0
    %237 = vmatprep.subr.bf16.mxu0 0
    %238 = vmatpush1.bf16.msra.mxu0 0
    %239 = vmatprep.subr.bf16.mxu0 0
    %240 = vmatpush1.bf16.msra.mxu0 0
    %241 = vmatprep.mubr.bf16.mxu0 0
    %242 = vmatmul.mubr.bf16.gmra.mrb[0].mxu0 %v127
    %v243 = vpop.f32.mrb[0].mxu0
    %v244 = vadd.f32 0.0, %v243
    %v245 = vpop.f32.mrb[0].mxu0
    %v246 = vadd.f32 0.0, %v245
    %v247 = vpop.f32.mrb[0].mxu0
    %v248 = vadd.f32 0.0, %v247
    %v249 = vpop.f32.mrb[0].mxu0
    %v250 = vadd.f32 0.0, %v249
    %251 = vdwg.mxu0
    %v252 = vpack.c.bf16 %v248, %v244
    %v255 = vunpack.c.l.b16 %v103
    %v256 = vunpack.c.l.b16 %v104
    %v257 = vpack.c.b16 %v256, %v255
    %vm258 = vcmask 130048
    %v260 = vsel %vm258, %v257, 0
    %262 = vmatprep.subr.bf16.mxu0 0
    %263 = vmatpush1.bf16.msra.mxu0 %v252
    %264 = vmatprep.subr.bf16.mxu0 0
    %265 = vmatpush1.bf16.msra.mxu0 0
    %266 = vmatprep.subr.bf16.mxu0 0
    %267 = vmatpush1.bf16.msra.mxu0 0
    %268 = vmatprep.subr.bf16.mxu0 0
    %269 = vmatpush1.bf16.msra.mxu0 0
    %270 = vmatprep.subr.bf16.mxu0 0
    %271 = vmatpush1.bf16.msra.mxu0 0
    %272 = vmatprep.subr.bf16.mxu0 0
    %273 = vmatpush1.bf16.msra.mxu0 0
    %274 = vmatprep.subr.bf16.mxu0 0
    %275 = vmatpush1.bf16.msra.mxu0 0
    %276 = vmatprep.subr.bf16.mxu0 0
    %277 = vmatpush1.bf16.msra.mxu0 0
    %278 = vmatprep.subr.bf16.mxu0 0
    %279 = vmatpush1.bf16.msra.mxu0 0
    %280 = vmatprep.subr.bf16.mxu0 0
    %281 = vmatpush1.bf16.msra.mxu0 0
    %282 = vmatprep.subr.bf16.mxu0 0
    %283 = vmatpush1.bf16.msra.mxu0 0
    %284 = vmatprep.subr.bf16.mxu0 0
    %285 = vmatpush1.bf16.msra.mxu0 0
    %286 = vmatprep.subr.bf16.mxu0 0
    %287 = vmatpush1.bf16.msra.mxu0 0
    %288 = vmatprep.subr.bf16.mxu0 0
    %289 = vmatpush1.bf16.msra.mxu0 0
    %290 = vmatprep.subr.bf16.mxu0 0
    %291 = vmatpush1.bf16.msra.mxu0 0
    %292 = vmatprep.subr.bf16.mxu0 0
    %293 = vmatpush1.bf16.msra.mxu0 0
    %294 = vmatprep.mubr.bf16.mxu0 0
    %295 = vmatmul.mubr.bf16.gmra.mrb[0].mxu0 %v260
    %v296 = vpop.f32.mrb[0].mxu0
    %v297 = vadd.f32 %v246, %v296
    %v298 = vpop.f32.mrb[0].mxu0
    %v299 = vpop.f32.mrb[0].mxu0
    %v300 = vadd.f32 %v250, %v299
    %v301 = vpop.f32.mrb[0].mxu0
    %302 = vdwg.mxu0
    %v303 = vld [vmem:[#allocation8] sm:$0x1]
    %v305 = vlaneseq
    %v306 = vshrl.u32 %v305, 7
    %v307 = vsub.s32 0, %v306
    %v308 = vrot.slane %v303, %v307
    %v310 = vadd.f32 %v297, %v308
    %v311 = vadd.f32 %v300, %v308
    %v312 = vmax.f32 %v310, 0.0
    %v313 = vmax.f32 %v311, 0.0
    %v314 = vpack.c.bf16 %v313, %v312
    %v315 = vld [vmem:[#allocation10] sm:$0xff]
    %v316 = vld [vmem:[#allocation10 + $0x8] sm:$0xff]
    %v317 = vld [vmem:[#allocation10 + $0x10] sm:$0xff]
    %v318 = vld [vmem:[#allocation10 + $0x18] sm:$0xff]
    %v319 = vld [vmem:[#allocation10 + $0x20] sm:$0xff]
    %v320 = vld [vmem:[#allocation10 + $0x28] sm:$0xff]
    %v321 = vld [vmem:[#allocation10 + $0x30] sm:$0xff]
    %v322 = vld [vmem:[#allocation10 + $0x38] sm:$0xff]
    %v323 = vld [vmem:[#allocation10 + $0x40] sm:$0xff]
    %v324 = vld [vmem:[#allocation10 + $0x48] sm:$0xff]
    %v325 = vld [vmem:[#allocation10 + $0x50] sm:$0xff]
    %v326 = vld [vmem:[#allocation10 + $0x58] sm:$0xff]
    %v327 = vld [vmem:[#allocation10 + $0x60] sm:$0xff]
    %v328 = vld [vmem:[#allocation10 + $0x68] sm:$0xff]
    %v329 = vld [vmem:[#allocation10 + $0x70] sm:$0xff]
    %v330 = vld [vmem:[#allocation10 + $0x78] sm:$0xff]
    %v347 = vunpack.c.l.b16 %v315
    %v348 = vunpack.c.h.b16 %v315
    %v349 = vunpack.c.l.b16 %v316
    %v350 = vunpack.c.h.b16 %v316
    %v351 = vunpack.c.l.b16 %v317
    %v352 = vunpack.c.h.b16 %v317
    %v353 = vunpack.c.l.b16 %v318
    %v354 = vunpack.c.h.b16 %v318
    %v355 = vunpack.c.l.b16 %v319
    %v356 = vunpack.c.h.b16 %v319
    %v357 = vunpack.c.l.b16 %v320
    %v358 = vunpack.c.h.b16 %v320
    %v359 = vunpack.c.l.b16 %v321
    %v360 = vunpack.c.h.b16 %v321
    %v361 = vunpack.c.l.b16 %v322
    %v362 = vunpack.c.h.b16 %v322
    %v363 = vunpack.c.l.b16 %v323
    %v364 = vunpack.c.h.b16 %v323
    %v365 = vunpack.c.l.b16 %v324
    %v366 = vunpack.c.h.b16 %v324
    %v367 = vunpack.c.l.b16 %v325
    %v368 = vunpack.c.h.b16 %v325
    %v369 = vunpack.c.l.b16 %v326
    %v370 = vunpack.c.h.b16 %v326
    %v371 = vunpack.c.l.b16 %v327
    %v372 = vunpack.c.h.b16 %v327
    %v373 = vunpack.c.l.b16 %v328
    %v374 = vunpack.c.h.b16 %v328
    %v375 = vunpack.c.l.b16 %v329
    %v376 = vunpack.c.h.b16 %v329
    %v377 = vunpack.c.l.b16 %v330
    %v378 = vunpack.c.h.b16 %v330
    %v379 = vpack.c.b16 %v349, %v347
    %v380 = vpack.c.b16 %v350, %v348
    %v381 = vpack.c.b16 %v353, %v351
    %v382 = vpack.c.b16 %v354, %v352
    %v383 = vpack.c.b16 %v357, %v355
    %v384 = vpack.c.b16 %v358, %v356
    %v385 = vpack.c.b16 %v361, %v359
    %v386 = vpack.c.b16 %v362, %v360
    %v387 = vpack.c.b16 %v365, %v363
    %v388 = vpack.c.b16 %v366, %v364
    %v389 = vpack.c.b16 %v369, %v367
    %v390 = vpack.c.b16 %v370, %v368
    %v391 = vpack.c.b16 %v373, %v371
    %v392 = vpack.c.b16 %v374, %v372
    %v393 = vpack.c.b16 %v377, %v375
    %v394 = vpack.c.b16 %v378, %v376
    %411 = vmatprep.subr.bf16.mxu0 %v380
    %412 = vmatpush1.bf16.msra.mxu0 %v379
    %413 = vmatprep.subr.bf16.mxu0 %v382
    %414 = vmatpush1.bf16.msra.mxu0 %v381
    %415 = vmatprep.subr.bf16.mxu0 %v384
    %416 = vmatpush1.bf16.msra.mxu0 %v383
    %417 = vmatprep.subr.bf16.mxu0 %v386
    %418 = vmatpush1.bf16.msra.mxu0 %v385
    %419 = vmatprep.subr.bf16.mxu0 %v388
    %420 = vmatpush1.bf16.msra.mxu0 %v387
    %421 = vmatprep.subr.bf16.mxu0 %v390
    %422 = vmatpush1.bf16.msra.mxu0 %v389
    %423 = vmatprep.subr.bf16.mxu0 %v392
    %424 = vmatpush1.bf16.msra.mxu0 %v391
    %425 = vmatprep.subr.bf16.mxu0 %v394
    %426 = vmatpush1.bf16.msra.mxu0 %v393
    %427 = vmatprep.subr.bf16.mxu0 0
    %428 = vmatpush1.bf16.msra.mxu0 0
    %429 = vmatprep.subr.bf16.mxu0 0
    %430 = vmatpush1.bf16.msra.mxu0 0
    %431 = vmatprep.subr.bf16.mxu0 0
    %432 = vmatpush1.bf16.msra.mxu0 0
    %433 = vmatprep.subr.bf16.mxu0 0
    %434 = vmatpush1.bf16.msra.mxu0 0
    %435 = vmatprep.subr.bf16.mxu0 0
    %436 = vmatpush1.bf16.msra.mxu0 0
    %437 = vmatprep.subr.bf16.mxu0 0
    %438 = vmatpush1.bf16.msra.mxu0 0
    %439 = vmatprep.subr.bf16.mxu0 0
    %440 = vmatpush1.bf16.msra.mxu0 0
    %441 = vmatprep.subr.bf16.mxu0 0
    %442 = vmatpush1.bf16.msra.mxu0 0
    %443 = vmatprep.mubr.bf16.mxu0 0
    %444 = vmatmul.mubr.bf16.gmra.mrb[0].mxu0 %v314
    %v445 = vpop.f32.mrb[0].mxu0
    %v446 = vadd.f32 0.0, %v445
    %v447 = vpop.f32.mrb[0].mxu0
    %v448 = vadd.f32 0.0, %v447
    %v449 = vpop.f32.mrb[0].mxu0
    %v450 = vadd.f32 0.0, %v449
    %v451 = vpop.f32.mrb[0].mxu0
    %v452 = vadd.f32 0.0, %v451
    %453 = vdwg.mxu0
    %v454 = vpack.c.bf16 %v450, %v446
    %455 = vmatprep.subr.bf16.mxu0 0
    %456 = vmatpush1.bf16.msra.mxu0 %v454
    %457 = vmatprep.subr.bf16.mxu0 0
    %458 = vmatpush1.bf16.msra.mxu0 0
    %459 = vmatprep.subr.bf16.mxu0 0
    %460 = vmatpush1.bf16.msra.mxu0 0
    %461 = vmatprep.subr.bf16.mxu0 0
    %462 = vmatpush1.bf16.msra.mxu0 0
    %463 = vmatprep.subr.bf16.mxu0 0
    %464 = vmatpush1.bf16.msra.mxu0 0
    %465 = vmatprep.subr.bf16.mxu0 0
    %466 = vmatpush1.bf16.msra.mxu0 0
    %467 = vmatprep.subr.bf16.mxu0 0
    %468 = vmatpush1.bf16.msra.mxu0 0
    %469 = vmatprep.subr.bf16.mxu0 0
    %470 = vmatpush1.bf16.msra.mxu0 0
    %471 = vmatprep.subr.bf16.mxu0 0
    %472 = vmatpush1.bf16.msra.mxu0 0
    %473 = vmatprep.subr.bf16.mxu0 0
    %474 = vmatpush1.bf16.msra.mxu0 0
    %475 = vmatprep.subr.bf16.mxu0 0
    %476 = vmatpush1.bf16.msra.mxu0 0
    %477 = vmatprep.subr.bf16.mxu0 0
    %478 = vmatpush1.bf16.msra.mxu0 0
    %479 = vmatprep.subr.bf16.mxu0 0
    %480 = vmatpush1.bf16.msra.mxu0 0
    %481 = vmatprep.subr.bf16.mxu0 0
    %482 = vmatpush1.bf16.msra.mxu0 0
    %483 = vmatprep.subr.bf16.mxu0 0
    %484 = vmatpush1.bf16.msra.mxu0 0
    %485 = vmatprep.subr.bf16.mxu0 0
    %486 = vmatpush1.bf16.msra.mxu0 0
    %487 = vmatprep.mubr.bf16.mxu0 0
    %488 = vmatmul.mubr.bf16.gmra.mrb[0].mxu0 %v260
    %v489 = vpop.f32.mrb[0].mxu0
    %v490 = vadd.f32 %v448, %v489
    %v491 = vpop.f32.mrb[0].mxu0
    %v492 = vpop.f32.mrb[0].mxu0
    %v493 = vadd.f32 %v452, %v492
    %v494 = vpop.f32.mrb[0].mxu0
    %495 = vdwg.mxu0
    %v496 = vld [vmem:[#allocation11] sm:$0x1]
    %v498 = vlaneseq
    %v499 = vshrl.u32 %v498, 7
    %v500 = vsub.s32 0, %v499
    %v501 = vrot.slane %v496, %v500
    %v503 = vadd.f32 %v490, %v501
    %v504 = vadd.f32 %v493, %v501
    %505 = vmax.xlane.f32.xlu0 %v503
    %v506 = vpop.xlane.xlu0 %505
    %507 = vmax.xlane.f32.xlu0 %v504
    %v508 = vpop.xlane.xlu0 %507
    %v509 = vsub.f32 %v503, %v506
    %v510 = vsub.f32 %v504, %v508
    %v511 = vmul.f32 %v509, 1.442695
    %v512 = vpow.pop %v511
    %v513 = vmul.f32 %v510, 1.442695
    %v514 = vpow.pop %v513
    %515 = vadd.xlane.f32.xlu0 %v512
    %v516 = vpop.xlane.xlu0 %515
    %517 = vadd.xlane.f32.xlu0 %v514
    %v518 = vpop.xlane.xlu0 %517
    %v519 = vlog2.pop %v516
    %v520 = vmul.f32 %v519, 0.6931472
    %v521 = vlog2.pop %v518
    %v522 = vmul.f32 %v521, 0.6931472
    %v523 = vadd.f32 %v506, %v520
    %v524 = vadd.f32 %v508, %v522
    %v525 = vsub.f32 %v503, %v523
    %v526 = vsub.f32 %v504, %v524
    %527 = vst [vmem:[#allocation13] sm:$0xff] %v525
    %528 = vst [vmem:[#allocation13 + $0x8] sm:$0xff] %v526
    // Predicated region
    $region50: #{sage_forward.1} parent=1 // pred_check
      _
    $region51: #{sage_forward.1} parent=1 // pred_check_branch
      %530 = sbr.rel (0) target = $region53
    $region52: #{sage_forward.1} parent=1 // pred_region
      %s532 = ssub.s32 256, 256
      %533 = vsyncadd [#allocation4], %s532
      %s534 = sshll.u32 [#allocation13], 4
      %s535 = int_to_ptr.vmem [resolvable:$true] %s534
      %540 = dma.vmem_to_hbm [thread:$0]  %s535, 256, %s6, [#allocation4], 128, 128, 8
    $region53: #{sage_forward.1} parent=1 // pred_fallthru
      _
    // Predicated region
    $region54: #{sage_forward.1} parent=1 // pred_check
      _
    $region55: #{sage_forward.1} parent=1 // pred_check_branch
      %542 = sbr.rel (0) target = $region57
    $region56: #{sage_forward.1} parent=1 // pred_region
      %543 = dma.done [#allocation4], 256
    $region57: #{sage_forward.1} parent=1 // pred_fallthru
      _
    %544 = vsyncpa [#allocation3], 1
    %545 = vsyncpa [#allocation6], 1
    %546 = vsyncpa [#allocation9], 1
    %547 = vsyncpa [#allocation12], 1
    %548 = vsyncpa [#allocation4], 1

</llo_original>
